<compile_context>
chip_gen: v7x
topology: tpu7x:2x2x1
jax: 0.10.0
libtpu: 0.0.40
codegen_flags: <defaults>
</compile_context>

<pallas_src>
import functools

import jax
import jax.numpy as jnp
from jax.experimental import pallas as pl
from jax.experimental.pallas import tpu as pltpu

_LANE = 128


def _round_up(n, m):
    return ((n + m - 1) // m) * m


def _sublane_multiple(dtype):
    # 32-bit dtypes pack 8 rows per vreg, 16-bit pack 16, 8-bit pack 32.
    return 32 // jnp.dtype(dtype).itemsize


def _vmem_capacity_bytes():
    """Per-TensorCore VMEM capacity; falls back to v7x's 64 MiB if unknown."""
    try:
        cap = int(getattr(pltpu.get_tpu_info(), "vmem_capacity_bytes", 0) or 0)
        if cap > 0:
            return cap
    except Exception:
        pass
    return 64 * 1024 * 1024


def _apply_activation(h, activation):
    if activation == "relu":
        return jnp.maximum(h, 0.0)
    if activation == "tanh":
        return jnp.tanh(h)
    if activation == "sigmoid":
        return jax.nn.sigmoid(h)
    raise ValueError("unrecognized activation '%s'" % activation)


def _largest_dividing_tile(batch, tb_cap, sublane):
    """Largest multiple of `sublane` that divides `batch` and is <= tb_cap, else None."""
    t = (tb_cap // sublane) * sublane
    while t >= sublane:
        if batch % t == 0:
            return t
        t -= sublane
    return None


# ----------------------------------------------------------------------------------
# Kernels
# ----------------------------------------------------------------------------------
def _ff_kernel(x_ref, w1_ref, b1_ref, w2_ref, b2_ref, o_ref, *, activation):
    """Fully fused path: weights VMEM-resident, one batch tile per grid step."""
    h = jnp.dot(x_ref[...], w1_ref[...], preferred_element_type=jnp.float32)
    h = _apply_activation(h + b1_ref[...], activation)
    # dropout: identity in eval/inference mode.
    h = h.astype(w2_ref.dtype)
    o = jnp.dot(h, w2_ref[...], preferred_element_type=jnp.float32) + b2_ref[...]
    o_ref[...] = o.astype(o_ref.dtype)


def _ff_ktiled_kernel(x_ref, w1_ref, b1_ref, w2_ref, b2_ref, o_ref, acc_ref, *,
                      activation):
    """K-tiled path: first matmul accumulated over the input-width grid axis."""
    k = pl.program_id(1)

    @pl.when(k == 0)
    def _():
        acc_ref[...] = jnp.zeros_like(acc_ref)

    acc_ref[...] += jnp.dot(x_ref[...], w1_ref[...],
                            preferred_element_type=jnp.float32)

    @pl.when(k == pl.num_programs(1) - 1)
    def _():
        h = _apply_activation(acc_ref[...] + b1_ref[...], activation)
        # dropout: identity in eval/inference mode.
        h = h.astype(w2_ref.dtype)
        o = jnp.dot(h, w2_ref[...], preferred_element_type=jnp.float32) + b2_ref[...]
        o_ref[...] = o.astype(o_ref.dtype)


# ----------------------------------------------------------------------------------
# Host wrapper
# ----------------------------------------------------------------------------------
def shrinking_ff_forward(x, w1, b1, w2, b2, *, activation="relu",
                         matmul_dtype=None, vmem_budget_bytes=None,
                         force_k_tiling=False, k_tile=None):
    """Fused eval-mode forward of ShrinkingFFModel.

    x : [B, input_width]
    w1: [input_width, shrink_width]   (pre-transposed vs torch nn.Linear.weight)
    b1: [shrink_width] or [1, shrink_width]
    w2: [shrink_width, output_width]
    b2: [output_width] or [1, output_width]
    matmul_dtype: optional dtype fed to the MXU dots (jnp.bfloat16 on v5e/v6e/v7x,
        or an fp8 dtype on v7x); accumulation is always f32.
    vmem_budget_bytes / force_k_tiling / k_tile: tuning & testing hooks.
    """
    B, in_w = x.shape
    sh_w = w1.shape[1]
    out_w = w2.shape[1]
    out_dtype = x.dtype

    b1 = jnp.asarray(b1).reshape(1, sh_w)
    b2 = jnp.asarray(b2).reshape(1, out_w)

    if matmul_dtype is not None:
        x = x.astype(matmul_dtype)
        w1 = w1.astype(matmul_dtype)
        w2 = w2.astype(matmul_dtype)

    x_bytes = x.dtype.itemsize
    w_bytes = w1.dtype.itemsize
    out_bytes = jnp.dtype(out_dtype).itemsize
    sublane = max(_sublane_multiple(x.dtype), _sublane_multiple(out_dtype))

    cap = _vmem_capacity_bytes()
    budget = int(vmem_budget_bytes) if vmem_budget_bytes is not None else int(cap * 0.78)
    vmem_limit = int(cap * 0.86)
    max_tile = 2048 if cap >= 100 * 1024 * 1024 else 1024

    # Shrink (hidden) dim padded to a lane multiple: touches only the small
    # weights/biases and keeps the hidden activations lane-dense.  Zero rows of w2
    # kill the padded hidden columns (even sigmoid(0)=0.5), so the math stays exact.
    sh_p = _round_up(sh_w, _LANE)
    if sh_p == sh_w:
        w1_a = w1
        w2_in = w2
        b1_in = b1.astype(jnp.float32)
    else:
        w1_a = jnp.zeros((in_w, sh_p), w1.dtype).at[:, :sh_w].set(w1)
        w2_in = jnp.zeros((sh_p, out_w), w2.dtype).at[:sh_w, :].set(w2)
        b1_in = jnp.zeros((1, sh_p), jnp.float32).at[:, :sh_w].set(b1.astype(jnp.float32))
    b2_in = b2.astype(jnp.float32)

    # ---------------- Path A: weights fully VMEM-resident, batch-tiled x/out -------
    # Budget terms: weights/biases counted double-buffered (conservative), plus a
    # double-buffered x/out tile and the f32 hidden / output temporaries per row.
    fixed = 2 * (in_w * sh_p + sh_p * out_w) * w_bytes + 2 * (sh_p + out_w) * 4
    per_row = (2 * in_w * x_bytes          # double-buffered x tile
               + 2 * out_w * out_bytes     # double-buffered out tile
               + sh_p * 4                  # f32 hidden
               + sh_p * w_bytes            # hidden cast fed to the 2nd dot
               + out_w * 4)                # f32 output accumulator

    tb = None
    if not force_k_tiling and budget - fixed >= per_row * sublane:
        tb = min((budget - fixed) // per_row, max_tile)

    if tb is not None:
        if tb >= B:
            TB, B_run, x_run = B, B, x                     # single full-extent tile
        else:
            TB = (tb // sublane) * sublane
            div = _largest_dividing_tile(B, TB, sublane)
            if div is not None and div >= max(sublane, TB // 4):
                TB, B_run, x_run = div, B, x               # tiles divide B: no copy
            else:
                B_run = _round_up(B, TB)                   # pad batch only if needed
                x_run = jnp.zeros((B_run, in_w), x.dtype).at[:B].set(x)

        flops = 2 * B_run * (in_w * sh_p + sh_p * out_w)
        transcend = B_run * sh_p if activation in ("tanh", "sigmoid") else 0
        bytes_accessed = (B_run * in_w * x_bytes
                          + (in_w * sh_p + sh_p * out_w) * w_bytes
                          + (sh_p + out_w) * 4
                          + B_run * out_w * out_bytes)

        out = pl.pallas_call(
            functools.partial(_ff_kernel, activation=activation),
            out_shape=jax.ShapeDtypeStruct((B_run, out_w), out_dtype),
            grid=(B_run // TB,),
            in_specs=[
                pl.BlockSpec((TB, in_w), lambda i: (i, 0)),     # x: batch-tiled
                pl.BlockSpec((in_w, sh_p), lambda i: (0, 0)),   # w1: VMEM-resident
                pl.BlockSpec((1, sh_p), lambda i: (0, 0)),      # b1: VMEM-resident
                pl.BlockSpec((sh_p, out_w), lambda i: (0, 0)),  # w2: VMEM-resident
                pl.BlockSpec((1, out_w), lambda i: (0, 0)),     # b2: VMEM-resident
            ],
            out_specs=pl.BlockSpec((TB, out_w), lambda i: (i, 0)),
            compiler_params=pltpu.CompilerParams(
                dimension_semantics=("parallel",),              # v7x: 2nd TC picks up tiles
                vmem_limit_bytes=vmem_limit),
            cost_estimate=pl.CostEstimate(flops=flops, transcendentals=transcend,
                                          bytes_accessed=bytes_accessed),
        )(x_run, w1_a, b1_in, w2_in, b2_in)
        return out if B_run == B else out[:B]

    # ---------------- Path B: K-tiled fallback (w1 too large to stay resident) -----
    k_candidates = [k_tile] if k_tile is not None else [2048, 1024, 512, 256, 128]
    choice = None
    for cand in k_candidates:
        tk = _round_up(min(int(cand), _round_up(in_w, _LANE)), _LANE)
        fixed_k = (2 * tk * sh_p * w_bytes        # double-buffered w1 K-slabs
                   + 2 * sh_p * out_w * w_bytes   # resident w2
                   + 2 * (sh_p + out_w) * 4)      # biases
        per_row_k = (2 * tk * x_bytes             # double-buffered x tile
                     + 2 * out_w * out_bytes      # double-buffered out tile
                     + sh_p * 4                   # f32 accumulator scratch
                     + sh_p * 4 + sh_p * w_bytes  # finalize temporaries
                     + out_w * 4)
        if budget - fixed_k >= per_row_k * sublane:
            choice = (tk, min((budget - fixed_k) // per_row_k, max_tile))
            break
    if choice is None:
        # TODO(synk): also tile the shrink/output dims for pathologically large layers.
        raise ValueError("ShrinkingFF layer too large for VMEM even with K-tiling")

    TK, tb = choice
    if tb >= B:
        TB, B_run = B, B
    else:
        TB = (tb // sublane) * sublane
        B_run = _round_up(B, TB)
    in_p = _round_up(in_w, TK)

    if B_run == B and in_p == in_w:
        x_run = x
    else:
        x_run = jnp.zeros((B_run, in_p), x.dtype).at[:B, :in_w].set(x)
    if in_p == in_w and sh_p == sh_w:
        w1_k = w1
    else:
        w1_k = jnp.zeros((in_p, sh_p), w1.dtype).at[:in_w, :sh_w].set(w1)

    flops = 2 * B_run * (in_p * sh_p + sh_p * out_w)
    transcend = B_run * sh_p if activation in ("tanh", "sigmoid") else 0
    bytes_accessed = (B_run * in_p * x_bytes
                      + (in_p * sh_p + sh_p * out_w) * w_bytes
                      + (sh_p + out_w) * 4
                      + B_run * out_w * out_bytes)

    out = pl.pallas_call(
        functools.partial(_ff_ktiled_kernel, activation=activation),
        out_shape=jax.ShapeDtypeStruct((B_run, out_w), out_dtype),
        grid=(B_run // TB, in_p // TK),
        in_specs=[
            pl.BlockSpec((TB, TK), lambda i, k: (i, k)),      # x: batch x K tiled
            pl.BlockSpec((TK, sh_p), lambda i, k: (k, 0)),    # w1: streamed over K
            pl.BlockSpec((1, sh_p), lambda i, k: (0, 0)),     # b1: VMEM-resident
            pl.BlockSpec((sh_p, out_w), lambda i, k: (0, 0)), # w2: VMEM-resident
            pl.BlockSpec((1, out_w), lambda i, k: (0, 0)),    # b2: VMEM-resident
        ],
        out_specs=pl.BlockSpec((TB, out_w), lambda i, k: (i, 0)),
        scratch_shapes=[pltpu.VMEM((TB, sh_p), jnp.float32)],
        compiler_params=pltpu.CompilerParams(
            dimension_semantics=("parallel", "arbitrary"),    # K axis is a reduction
            vmem_limit_bytes=vmem_limit),
        cost_estimate=pl.CostEstimate(flops=flops, transcendentals=transcend,
                                      bytes_accessed=bytes_accessed),
    )(x_run, w1_k, b1_in, w2_in, b2_in)
    return out if B_run == B else out[:B]


# ----------------------------------------------------------------------------------
# Parameter init (mimics nn.Linear: U(-1/sqrt(fan_in), +1/sqrt(fan_in))) & reference
# ----------------------------------------------------------------------------------
def init_params(key, input_width, shrink_width, output_width):
    k1, k2, k3, k4 = jax.random.split(key, 4)
    bound1 = 1.0 / jnp.sqrt(input_width)
    bound2 = 1.0 / jnp.sqrt(shrink_width)
    w1 = jax.random.uniform(k1, (input_width, shrink_width), jnp.float32, -bound1, bound1)
    b1 = jax.random.uniform(k2, (1, shrink_width), jnp.float32, -bound1, bound1)
    w2 = jax.random.uniform(k3, (shrink_width, output_width), jnp.float32, -bound2, bound2)
    b2 = jax.random.uniform(k4, (1, output_width), jnp.float32, -bound2, bound2)
    return w1, b1, w2, b2


def _reference(x, w1, b1, w2, b2, activation):
    h = x @ w1 + b1
    if activation == "relu":
        h = jnp.maximum(h, 0.0)
    elif activation == "tanh":
        h = jnp.tanh(h)
    else:
        h = jax.nn.sigmoid(h)
    return h @ w2 + b2


if __name__ == "__main__":
    root = jax.random.PRNGKey(0)
    keys = jax.random.split(root, 8)

    def run_case(key, batch, in_w, sh_w, out_w, activation,
                 atol=1e-5, rtol=1e-5, **kw):
        kx, kp = jax.random.split(key)
        x = jax.random.normal(kx, (batch, in_w), jnp.float32)
        w1, b1, w2, b2 = init_params(kp, in_w, sh_w, out_w)
        out = shrinking_ff_forward(x, w1, b1, w2, b2, activation=activation, **kw)
        out = jax.block_until_ready(out)
        ref = _reference(x, w1, b1, w2, b2, activation)
        return out.shape == ref.shape and bool(
            jnp.allclose(out, ref, atol=atol, rtol=rtol))

    ok = True
    # Small shapes consistent with the module's pure feed-forward on 2D input.
    ok &= run_case(keys[0], 8, 32, 16, 8, "relu")
    ok &= run_case(keys[1], 8, 32, 16, 8, "tanh")
    ok &= run_case(keys[2], 8, 32, 16, 8, "sigmoid")
    # bf16 MXU fast path (f32 accumulation): looser tolerance for bf16 mantissa.
    ok &= run_case(keys[3], 8, 32, 16, 8, "relu",
                   atol=2e-2, rtol=2e-2, matmul_dtype=jnp.bfloat16)
    # Ragged shapes: full-extent blocks, no host-side padding of x or the output.
    ok &= run_case(keys[4], 13, 100, 48, 10, "sigmoid", atol=1e-4, rtol=1e-4)
    # Batch-tiled path (tiny budget forces tiling); 300 % TB != 0 -> padded-batch path.
    ok &= run_case(keys[5], 300, 256, 128, 64, "relu", atol=1e-4, rtol=1e-4,
                   vmem_budget_bytes=700_000)
    # Batch-tiled path where a divisor tile is found -> no padded copy of x at all.
    ok &= run_case(keys[6], 320, 256, 128, 64, "relu", atol=1e-4, rtol=1e-4,
                   vmem_budget_bytes=700_000)
    # K-tiled fallback path (v7x-style: w1 streamed over the input-width axis).
    ok &= run_case(keys[7], 24, 400, 128, 64, "tanh", atol=1e-4, rtol=1e-4,
                   force_k_tiling=True, k_tile=128)

    print("KERNEL_OK" if ok else "KERNEL_MISMATCH")
</pallas_src>

<mosaic_0001>
module attributes {stable_mosaic.version = 11 : i64} {
  func.func @_ff_kernel(%arg0: i32, %arg1: memref<8x32xf32, #tpu.memory_space<vmem>>, %arg2: memref<32x128xf32, #tpu.memory_space<vmem>>, %arg3: memref<1x128xf32, #tpu.memory_space<vmem>>, %arg4: memref<128x8xf32, #tpu.memory_space<vmem>>, %arg5: memref<1x8xf32, #tpu.memory_space<vmem>>, %arg6: memref<8x8xf32, #tpu.memory_space<vmem>>) attributes {dimension_semantics = [#tpu.dimension_semantics<parallel>], iteration_bounds = array<i64: 1>, scalar_prefetch = 0 : i64, scratch_operands = 0 : i64, tpu.core_type = #tpu.core_type<tc>, window_params = [{transform_indices = @transform_0, window_bounds = array<i64: 8, 32>}, {pipeline_mode = #tpu.pipeline_mode<synchronous>, transform_indices = @transform_1, window_bounds = array<i64: 32, 128>}, {pipeline_mode = #tpu.pipeline_mode<synchronous>, transform_indices = @transform_2, window_bounds = array<i64: 1, 128>}, {pipeline_mode = #tpu.pipeline_mode<synchronous>, transform_indices = @transform_3, window_bounds = array<i64: 128, 8>}, {pipeline_mode = #tpu.pipeline_mode<synchronous>, transform_indices = @transform_4, window_bounds = array<i64: 1, 8>}, {transform_indices = @transform_5, window_bounds = array<i64: 8, 8>}]} {
    %c0 = arith.constant 0 : index
    %c0_0 = arith.constant 0 : index
    %0 = vector.load %arg1[%c0, %c0_0] : memref<8x32xf32, #tpu.memory_space<vmem>>, vector<8x32xf32>
    %c0_1 = arith.constant 0 : index
    %c0_2 = arith.constant 0 : index
    %1 = vector.load %arg2[%c0_1, %c0_2] : memref<32x128xf32, #tpu.memory_space<vmem>>, vector<32x128xf32>
    %cst = arith.constant dense<0.000000e+00> : vector<8x128xf32>
    %2 = tpu.matmul %0, %1, %cst {dimension_numbers = #tpu.dot_dimension_numbers<[1], [0], [0], [1], [0, 0, 1, 1], [], []>} : vector<8x32xf32>, vector<32x128xf32>, vector<8x128xf32> -> vector<8x128xf32>
    %c0_3 = arith.constant 0 : index
    %c0_4 = arith.constant 0 : index
    %3 = vector.load %arg3[%c0_3, %c0_4] : memref<1x128xf32, #tpu.memory_space<vmem>>, vector<1x128xf32>
    %4 = vector.broadcast %3 : vector<1x128xf32> to vector<8x128xf32>
    %5 = arith.addf %2, %4 : vector<8x128xf32>
    %cst_5 = arith.constant 0.000000e+00 : f32
    %6 = vector.broadcast %cst_5 : f32 to vector<8x128xf32>
    %7 = arith.maximumf %5, %6 : vector<8x128xf32>
    %c0_6 = arith.constant 0 : index
    %c0_7 = arith.constant 0 : index
    %8 = vector.load %arg4[%c0_6, %c0_7] : memref<128x8xf32, #tpu.memory_space<vmem>>, vector<128x8xf32>
    %cst_8 = arith.constant dense<0.000000e+00> : vector<8x8xf32>
    %9 = tpu.matmul %7, %8, %cst_8 {dimension_numbers = #tpu.dot_dimension_numbers<[1], [0], [0], [1], [0, 0, 1, 1], [], []>} : vector<8x128xf32>, vector<128x8xf32>, vector<8x8xf32> -> vector<8x8xf32>
    %c0_9 = arith.constant 0 : index
    %c0_10 = arith.constant 0 : index
    %10 = vector.load %arg5[%c0_9, %c0_10] : memref<1x8xf32, #tpu.memory_space<vmem>>, vector<1x8xf32>
    %11 = vector.broadcast %10 : vector<1x8xf32> to vector<8x8xf32>
    %12 = arith.addf %9, %11 : vector<8x8xf32>
    %c0_11 = arith.constant 0 : index
    %c0_12 = arith.constant 0 : index
    %13 = vector.load %arg6[%c0_11, %c0_12] : memref<8x8xf32, #tpu.memory_space<vmem>>, vector<8x8xf32>
    tpu.vector_store %arg6[%c0_11, %c0_12], %12 {strides = array<i32>} : memref<8x8xf32, #tpu.memory_space<vmem>>, vector<8x8xf32>,
    return
  }
  func.func @transform_0(%arg0: i32) -> (i32, i32) {
    %c0_i32 = arith.constant 0 : i32
    %c0_i32_0 = arith.constant 0 : i32
    return %arg0, %c0_i32 : i32, i32
  }
  func.func @transform_1(%arg0: i32) -> (i32, i32) {
    %c0_i32 = arith.constant 0 : i32
    %c0_i32_0 = arith.constant 0 : i32
    %c0_i32_1 = arith.constant 0 : i32
    return %c0_i32, %c0_i32_0 : i32, i32
  }
  func.func @transform_2(%arg0: i32) -> (i32, i32) {
    %c0_i32 = arith.constant 0 : i32
    %c0_i32_0 = arith.constant 0 : i32
    %c0_i32_1 = arith.constant 0 : i32
    return %c0_i32, %c0_i32_0 : i32, i32
  }
  func.func @transform_3(%arg0: i32) -> (i32, i32) {
    %c0_i32 = arith.constant 0 : i32
    %c0_i32_0 = arith.constant 0 : i32
    %c0_i32_1 = arith.constant 0 : i32
    return %c0_i32, %c0_i32_0 : i32, i32
  }
  func.func @transform_4(%arg0: i32) -> (i32, i32) {
    %c0_i32 = arith.constant 0 : i32
    %c0_i32_0 = arith.constant 0 : i32
    %c0_i32_1 = arith.constant 0 : i32
    return %c0_i32, %c0_i32_0 : i32, i32
  }
  func.func @transform_5(%arg0: i32) -> (i32, i32) {
    %c0_i32 = arith.constant 0 : i32
    %c0_i32_0 = arith.constant 0 : i32
    return %arg0, %c0_i32 : i32, i32
  }
}

</mosaic_0001>

<llo_original>
// kernel: tpu_custom_call.1
$region0: #{tpu_custom_call.1}
  #allocation0 [shape = 'u32[]', space=smem, size = 0x4, offset = 0x4, fixed_abs, tag = 'smem constant byte address 0x4 - core index']
  #allocation1 [shape = 'u32[144,128]{1,0:T(1,128)}', space=vmem, size = 0x12000, scoped, tag = 'internal scratch']
  %s0 = inlined_call_operand.vmem [shape: f32[8,32], index: 0, kind: input, shape index: {}]
  %s1 = inlined_call_operand.vmem [shape: f32[32,128], index: 1, kind: input, shape index: {}]
  %s2 = inlined_call_operand.vmem [shape: f32[1,128], index: 2, kind: input, shape index: {}]
  %s3 = inlined_call_operand.vmem [shape: f32[128,8], index: 3, kind: input, shape index: {}]
  %s4 = inlined_call_operand.vmem [shape: f32[1,8], index: 4, kind: input, shape index: {}]
  %s5 = inlined_call_operand.hbm [shape: f32[8,8], index: 5, kind: output, shape index: {}]
  %s6 = sld [smem:[#allocation0]]
  $region30: #{tpu_custom_call.1} parent=0
    _
  %s8 = ssub.s32 1, %s6
  %s9 = scalar_select 0, %s8, %s6
  $region1: #{tpu_custom_call.1} parent=0
    #allocation2 [shape = 'u8[4096]{0}', space=vmem, size = 0x1000, scoped, tag = 'output window, operand 0, single buffered']
    #allocation3 [shape = 's32[1]{0}', space=sflag, size = 0x4, scoped, tag = 'scoped memory for tpu_custom_call.1']
    %10 = vsyncpa [#allocation3], 0
    // Predicated region
    $region2: #{tpu_custom_call.1} parent=1 // pred_check
      _
    $region3: #{tpu_custom_call.1} parent=1 // pred_check_branch
      %12 = sbr.rel (0) target = $region5
    $region4: #{tpu_custom_call.1} parent=1 // pred_region
      _
    $region5: #{tpu_custom_call.1} parent=1 // pred_fallthru
      _
    // Predicated region
    $region6: #{tpu_custom_call.1} parent=1 // pred_check
      _
    $region7: #{tpu_custom_call.1} parent=1 // pred_check_branch
      %14 = sbr.rel (0) target = $region9
    $region8: #{tpu_custom_call.1} parent=1 // pred_region
      _
    $region9: #{tpu_custom_call.1} parent=1 // pred_fallthru
      _
    // Predicated region
    $region10: #{tpu_custom_call.1} parent=1 // pred_check
      _
    $region11: #{tpu_custom_call.1} parent=1 // pred_check_branch
      %16 = sbr.rel (0) target = $region13
    $region12: #{tpu_custom_call.1} parent=1 // pred_region
      _
    $region13: #{tpu_custom_call.1} parent=1 // pred_fallthru
      _
    // Predicated region
    $region14: #{tpu_custom_call.1} parent=1 // pred_check
      _
    $region15: #{tpu_custom_call.1} parent=1 // pred_check_branch
      %18 = sbr.rel (0) target = $region17
    $region16: #{tpu_custom_call.1} parent=1 // pred_region
      _
    $region17: #{tpu_custom_call.1} parent=1 // pred_fallthru
      _
    // Predicated region
    $region18: #{tpu_custom_call.1} parent=1 // pred_check
      _
    $region19: #{tpu_custom_call.1} parent=1 // pred_check_branch
      %20 = sbr.rel (0) target = $region21
    $region20: #{tpu_custom_call.1} parent=1 // pred_region
      _
    $region21: #{tpu_custom_call.1} parent=1 // pred_fallthru
      _
    %v21 = vld [vmem:[%s0] sm:$0xff]
    %v22 = vld [vmem:[%s1] sm:$0xff]
    %v23 = vld [vmem:[%s1 + $0x8] sm:$0xff]
    %v24 = vld [vmem:[%s1 + $0x10] sm:$0xff]
    %v25 = vld [vmem:[%s1 + $0x18] sm:$0xff]
    %v26 = vld [vmem:[%s2] sm:$0x1]
    %v28 = vlaneseq
    %v29 = vshrl.u32 %v28, 7
    %v30 = vsub.s32 0, %v29
    %v31 = vrot.slane %v26, %v30
    %vm33 = vcmask 261120
    %v35 = vsel %vm33, %v21, 0
    %37 = vmatprep.subr.mxu0 0.0
    %38 = vmatpush1.msra.mxu0 %v22
    %39 = vmatprep.subr.mxu0 0.0
    %40 = vmatpush1.msra.mxu0 %v23
    %41 = vmatprep.subr.mxu0 0.0
    %42 = vmatpush1.msra.mxu0 %v24
    %43 = vmatprep.subr.mxu0 0.0
    %44 = vmatpush1.msra.mxu0 %v25
    %45 = vmatprep.subr.mxu0 0.0
    %46 = vmatpush1.msra.mxu0 0.0
    %47 = vmatprep.subr.mxu0 0.0
    %48 = vmatpush1.msra.mxu0 0.0
    %49 = vmatprep.subr.mxu0 0.0
    %50 = vmatpush1.msra.mxu0 0.0
    %51 = vmatprep.subr.mxu0 0.0
    %52 = vmatpush1.msra.mxu0 0.0
    %53 = vmatprep.subr.mxu0 0.0
    %54 = vmatpush1.msra.mxu0 0.0
    %55 = vmatprep.subr.mxu0 0.0
    %56 = vmatpush1.msra.mxu0 0.0
    %57 = vmatprep.subr.mxu0 0.0
    %58 = vmatpush1.msra.mxu0 0.0
    %59 = vmatprep.subr.mxu0 0.0
    %60 = vmatpush1.msra.mxu0 0.0
    %61 = vmatprep.subr.mxu0 0.0
    %62 = vmatpush1.msra.mxu0 0.0
    %63 = vmatprep.subr.mxu0 0.0
    %64 = vmatpush1.msra.mxu0 0.0
    %65 = vmatprep.subr.mxu0 0.0
    %66 = vmatpush1.msra.mxu0 0.0
    %67 = vmatprep.subr.mxu0 0.0
    %68 = vmatpush1.msra.mxu0 0.0
    %69 = vmatprep.subr.mxu0 0.0
    %70 = vmatpush1.msra.mxu0 0.0
    %71 = vmatprep.subr.mxu0 0.0
    %72 = vmatpush1.msra.mxu0 0.0
    %73 = vmatprep.subr.mxu0 0.0
    %74 = vmatpush1.msra.mxu0 0.0
    %75 = vmatprep.subr.mxu0 0.0
    %76 = vmatpush1.msra.mxu0 0.0
    %77 = vmatprep.subr.mxu0 0.0
    %78 = vmatpush1.msra.mxu0 0.0
    %79 = vmatprep.subr.mxu0 0.0
    %80 = vmatpush1.msra.mxu0 0.0
    %81 = vmatprep.subr.mxu0 0.0
    %82 = vmatpush1.msra.mxu0 0.0
    %83 = vmatprep.subr.mxu0 0.0
    %84 = vmatpush1.msra.mxu0 0.0
    %85 = vmatprep.subr.mxu0 0.0
    %86 = vmatpush1.msra.mxu0 0.0
    %87 = vmatprep.subr.mxu0 0.0
    %88 = vmatpush1.msra.mxu0 0.0
    %89 = vmatprep.subr.mxu0 0.0
    %90 = vmatpush1.msra.mxu0 0.0
    %91 = vmatprep.subr.mxu0 0.0
    %92 = vmatpush1.msra.mxu0 0.0
    %93 = vmatprep.subr.mxu0 0.0
    %94 = vmatpush1.msra.mxu0 0.0
    %95 = vmatprep.subr.mxu0 0.0
    %96 = vmatpush1.msra.mxu0 0.0
    %97 = vmatprep.subr.mxu0 0.0
    %98 = vmatpush1.msra.mxu0 0.0
    %99 = vmatprep.subr.mxu0 0.0
    %100 = vmatpush1.msra.mxu0 0.0
    %101 = vmatprep.mubr.f32.mxu0 0.0
    %102 = vmatmul.mubr.f32.gmra.mrb[0].mxu0 %v35
    %v103 = vpop.f32.mrb[0].mxu0
    %v104 = vadd.f32 %v31, %v103
    %v105 = vpop.f32.mrb[0].mxu0
    %106 = vdwg.mxu0
    %v107 = vmax.f32 %v104, 0.0
    %v108 = vld [vmem:[%s3] sm:$0xff]
    %v109 = vld [vmem:[%s3 + $0x8] sm:$0xff]
    %v110 = vld [vmem:[%s3 + $0x10] sm:$0xff]
    %v111 = vld [vmem:[%s3 + $0x18] sm:$0xff]
    %v112 = vld [vmem:[%s3 + $0x20] sm:$0xff]
    %v113 = vld [vmem:[%s3 + $0x28] sm:$0xff]
    %v114 = vld [vmem:[%s3 + $0x30] sm:$0xff]
    %v115 = vld [vmem:[%s3 + $0x38] sm:$0xff]
    %v116 = vld [vmem:[%s3 + $0x40] sm:$0xff]
    %v117 = vld [vmem:[%s3 + $0x48] sm:$0xff]
    %v118 = vld [vmem:[%s3 + $0x50] sm:$0xff]
    %v119 = vld [vmem:[%s3 + $0x58] sm:$0xff]
    %v120 = vld [vmem:[%s3 + $0x60] sm:$0xff]
    %v121 = vld [vmem:[%s3 + $0x68] sm:$0xff]
    %v122 = vld [vmem:[%s3 + $0x70] sm:$0xff]
    %v123 = vld [vmem:[%s3 + $0x78] sm:$0xff]
    %v124 = vld [vmem:[%s4] sm:$0x1]
    %v126 = vlaneseq
    %v127 = vshrl.u32 %v126, 7
    %v128 = vsub.s32 0, %v127
    %v129 = vrot.slane %v124, %v128
    %131 = vmatprep.subr.mxu0 0.0
    %132 = vmatpush1.msra.mxu0 %v108
    %133 = vmatprep.subr.mxu0 0.0
    %134 = vmatpush1.msra.mxu0 %v109
    %135 = vmatprep.subr.mxu0 0.0
    %136 = vmatpush1.msra.mxu0 %v110
    %137 = vmatprep.subr.mxu0 0.0
    %138 = vmatpush1.msra.mxu0 %v111
    %139 = vmatprep.subr.mxu0 0.0
    %140 = vmatpush1.msra.mxu0 %v112
    %141 = vmatprep.subr.mxu0 0.0
    %142 = vmatpush1.msra.mxu0 %v113
    %143 = vmatprep.subr.mxu0 0.0
    %144 = vmatpush1.msra.mxu0 %v114
    %145 = vmatprep.subr.mxu0 0.0
    %146 = vmatpush1.msra.mxu0 %v115
    %147 = vmatprep.subr.mxu0 0.0
    %148 = vmatpush1.msra.mxu0 %v116
    %149 = vmatprep.subr.mxu0 0.0
    %150 = vmatpush1.msra.mxu0 %v117
    %151 = vmatprep.subr.mxu0 0.0
    %152 = vmatpush1.msra.mxu0 %v118
    %153 = vmatprep.subr.mxu0 0.0
    %154 = vmatpush1.msra.mxu0 %v119
    %155 = vmatprep.subr.mxu0 0.0
    %156 = vmatpush1.msra.mxu0 %v120
    %157 = vmatprep.subr.mxu0 0.0
    %158 = vmatpush1.msra.mxu0 %v121
    %159 = vmatprep.subr.mxu0 0.0
    %160 = vmatpush1.msra.mxu0 %v122
    %161 = vmatprep.subr.mxu0 0.0
    %162 = vmatpush1.msra.mxu0 %v123
    %163 = vmatprep.subr.mxu0 0.0
    %164 = vmatpush1.msra.mxu0 0.0
    %165 = vmatprep.subr.mxu0 0.0
    %166 = vmatpush1.msra.mxu0 0.0
    %167 = vmatprep.subr.mxu0 0.0
    %168 = vmatpush1.msra.mxu0 0.0
    %169 = vmatprep.subr.mxu0 0.0
    %170 = vmatpush1.msra.mxu0 0.0
    %171 = vmatprep.subr.mxu0 0.0
    %172 = vmatpush1.msra.mxu0 0.0
    %173 = vmatprep.subr.mxu0 0.0
    %174 = vmatpush1.msra.mxu0 0.0
    %175 = vmatprep.subr.mxu0 0.0
    %176 = vmatpush1.msra.mxu0 0.0
    %177 = vmatprep.subr.mxu0 0.0
    %178 = vmatpush1.msra.mxu0 0.0
    %179 = vmatprep.subr.mxu0 0.0
    %180 = vmatpush1.msra.mxu0 0.0
    %181 = vmatprep.subr.mxu0 0.0
    %182 = vmatpush1.msra.mxu0 0.0
    %183 = vmatprep.subr.mxu0 0.0
    %184 = vmatpush1.msra.mxu0 0.0
    %185 = vmatprep.subr.mxu0 0.0
    %186 = vmatpush1.msra.mxu0 0.0
    %187 = vmatprep.subr.mxu0 0.0
    %188 = vmatpush1.msra.mxu0 0.0
    %189 = vmatprep.subr.mxu0 0.0
    %190 = vmatpush1.msra.mxu0 0.0
    %191 = vmatprep.subr.mxu0 0.0
    %192 = vmatpush1.msra.mxu0 0.0
    %193 = vmatprep.subr.mxu0 0.0
    %194 = vmatpush1.msra.mxu0 0.0
    %195 = vmatprep.mubr.f32.mxu0 0.0
    %196 = vmatmul.mubr.f32.gmra.mrb[0].mxu0 %v107
    %v197 = vpop.f32.mrb[0].mxu0
    %v198 = vadd.f32 %v129, %v197
    %v199 = vpop.f32.mrb[0].mxu0
    %200 = vdwg.mxu0
    %vm201 = vcmask 64512
    %202 = vst.msk [vmem:[#allocation2] sm:$0xff] %vm201, %v198
    // Predicated region
    $region22: #{tpu_custom_call.1} parent=1 // pred_check
      _
    $region23: #{tpu_custom_call.1} parent=1 // pred_check_branch
      %204 = sbr.rel (0) target = $region25
    $region24: #{tpu_custom_call.1} parent=1 // pred_region
      %s206 = ssub.s32 128, 128
      %207 = vsyncadd [#allocation3], %s206
      %s209 = sshll.u32 [#allocation2], 4
      %s210 = int_to_ptr.vmem [resolvable:$true] %s209
      %212 = dma.vmem_to_hbm [thread:$0]  %s210, 128, %s5, [#allocation3]
    $region25: #{tpu_custom_call.1} parent=1 // pred_fallthru
      _
    // Predicated region
    $region26: #{tpu_custom_call.1} parent=1 // pred_check
      _
    $region27: #{tpu_custom_call.1} parent=1 // pred_check_branch
      %214 = sbr.rel (0) target = $region29
    $region28: #{tpu_custom_call.1} parent=1 // pred_region
      %215 = dma.done [#allocation3], 128
    $region29: #{tpu_custom_call.1} parent=1 // pred_fallthru
      _
    %216 = vsyncpa [#allocation3], 1

</llo_original>
